<compile_context>
chip_gen: v5e
topology: v5e:2x2
jax: 0.10.0
libtpu: 0.0.40
codegen_flags: <defaults>
</compile_context>

<pallas_src>
import math

import numpy as np

import jax
import jax.numpy as jnp
from jax.experimental import pallas as pl
from jax.experimental.pallas import tpu as pltpu

LN_EPS = 1e-5
MASK_NEG = -1e30          # finite "‑inf": avoids NaN for fully-masked rows
VMEM_LIMIT = 48 * 1024 * 1024   # explicit scoped-VMEM budget (fits v7x 64 MiB physical)


# ------------------------------ tiling helpers ------------------------------
def _pick_row_tile(n):
    for c in (512, 256, 128, 64, 32, 16, 8):
        if n >= c and n % c == 0:
            return c
    return n


def _pick_f_tile(f):
    for c in (2048, 1024, 512):
        if f % c == 0:
            return c
    return f


# ----------------------- rel-shift implementation probe ----------------------
# We need bd[i, j] = bd_full[i, (T-1) - i + j] (Transformer-XL rel_shift).  With a
# strided lane rotation this is roll(bd_full, axis=1) with a per-row shift; the probe
# determines the hardware roll convention once per T and caches it.
_REL_SHIFT_MODE_CACHE = {}


def _rel_shift_mode(T):
    """Returns ('roll', shift, stride) or ('unroll', 0, 0).  Call outside jit."""
    if T in _REL_SHIFT_MODE_CACHE:
        return _REL_SHIFT_MODE_CACHE[T]
    N = 2 * T - 1
    base = np.arange(T * N, dtype=np.float32).reshape(T, N)
    ii = np.arange(T)[:, None]
    jj = np.arange(T)[None, :]
    expected = base[ii, (T - 1) - ii + jj]

    mode = ("unroll", 0, 0)
    # candidates cover both roll directions and both stride sign conventions
    for shift, stride in ((T, 1), (T - 1, N - 1), (T, N - 1), (T - 1, 1)):
        def probe_kernel(x_ref, o_ref, _s=shift, _st=stride):
            o_ref[...] = pltpu.roll(x_ref[...], _s, 1, stride=_st, stride_axis=0)[:, :T]

        try:
            got = pl.pallas_call(
                probe_kernel,
                out_shape=jax.ShapeDtypeStruct((T, T), jnp.float32),
            )(jnp.asarray(base))
            got = np.asarray(jax.block_until_ready(got))
        except Exception:
            continue
        if np.array_equal(got, expected):
            mode = ("roll", shift, stride)
            break
    _REL_SHIFT_MODE_CACHE[T] = mode
    return mode


# ----------------------- fused LayerNorm + matmul kernel ---------------------
def _ln_matmul_kernel(x_ref, g_ref, b_ref, w_ref, bias_ref, o_ref):
    x = x_ref[...].astype(jnp.float32)
    mu = jnp.mean(x, axis=-1, keepdims=True)
    var = jnp.mean(jnp.square(x - mu), axis=-1, keepdims=True)
    xn = (x - mu) * jax.lax.rsqrt(var + LN_EPS)
    xn = (xn * g_ref[...] + b_ref[...]).astype(jnp.bfloat16)
    acc = jnp.dot(xn, w_ref[...], preferred_element_type=jnp.float32)
    o_ref[...] = (acc + bias_ref[...]).astype(o_ref.dtype)


def ln_matmul(x2, gamma, beta, w_bf16, bias):
    n, d = x2.shape
    dout = w_bf16.shape[1]
    tr = _pick_row_tile(n)
    return pl.pallas_call(
        _ln_matmul_kernel,
        grid=(n // tr,),
        in_specs=[
            pl.BlockSpec((tr, d), lambda i: (i, 0)),
            pl.BlockSpec((1, d), lambda i: (0, 0)),
            pl.BlockSpec((1, d), lambda i: (0, 0)),
            pl.BlockSpec((d, dout), lambda i: (0, 0)),   # weight stays resident
            pl.BlockSpec((1, dout), lambda i: (0, 0)),
        ],
        out_specs=pl.BlockSpec((tr, dout), lambda i: (i, 0)),
        out_shape=jax.ShapeDtypeStruct((n, dout), jnp.bfloat16),
        compiler_params=pltpu.CompilerParams(
            dimension_semantics=("parallel",),
            vmem_limit_bytes=VMEM_LIMIT),
    )(x2, gamma.reshape(1, -1), beta.reshape(1, -1), w_bf16, bias.reshape(1, -1))


# ----------------------------- plain matmul (pos proj) ----------------------
def _matmul_kernel(x_ref, w_ref, o_ref):
    o_ref[...] = jnp.dot(
        x_ref[...], w_ref[...], preferred_element_type=jnp.float32
    ).astype(o_ref.dtype)


def matmul_bf16(x_bf16, w_bf16):
    n, dout = x_bf16.shape[0], w_bf16.shape[1]
    return pl.pallas_call(
        _matmul_kernel,
        out_shape=jax.ShapeDtypeStruct((n, dout), jnp.bfloat16),
    )(x_bf16, w_bf16)


# ----------- relative self-attention + out_proj + residual (per batch) ------
def _make_attn_kernel(T, H, dh, D, scale, shift_mode, roll_shift, roll_stride):
    def rel_shift(bd_full):
        # bd_full[i, p] = (q_i + r_r_bias) . r[p]; want bd[i, j] = bd_full[i, T-1-i+j]
        if shift_mode == "roll":
            rolled = pltpu.roll(bd_full, roll_shift, 1,
                                stride=roll_stride, stride_axis=0)
            return rolled[:, :T]
        # exact statically-unrolled fallback (safety net, fine for small T)
        rows = [bd_full[i:i + 1, (T - 1 - i):(2 * T - 1 - i)] for i in range(T)]
        return jnp.concatenate(rows, axis=0)

    def kernel(qkv_ref, r_ref, rwb_ref, rrb_ref, mb_ref, x_ref, wo_ref, bo_ref,
               o_ref, ctx_ref):
        mb = mb_ref[0]                                   # [1, T] additive mask bias
        rwb = rwb_ref[...].astype(jnp.bfloat16)          # [H, dh]
        rrb = rrb_ref[...].astype(jnp.bfloat16)
        for h in range(H):                               # heads folded into one step
            sl = slice(h * dh, (h + 1) * dh)
            qh = qkv_ref[:, sl]                          # [T, dh] bf16
            kh = qkv_ref[:, D + h * dh:D + (h + 1) * dh]
            vh = qkv_ref[:, 2 * D + h * dh:2 * D + (h + 1) * dh]
            rh = r_ref[:, sl]                            # [2T-1, dh] bf16

            # content term (q + r_w_bias) . k  -> MXU
            ac = jax.lax.dot_general(
                qh + rwb[h:h + 1, :], kh, (((1,), (1,)), ((), ())),
                preferred_element_type=jnp.float32)      # [T, T]
            # position term (q + r_r_bias) . r  -> MXU, then in-kernel rel_shift
            bd_full = jax.lax.dot_general(
                qh + rrb[h:h + 1, :], rh, (((1,), (1,)), ((), ())),
                preferred_element_type=jnp.float32)      # [T, 2T-1]
            bd = rel_shift(bd_full)                      # [T, T]

            s = (ac + bd) * scale + mb                   # masked_fill via -1e30 bias
            s = s - jnp.max(s, axis=-1, keepdims=True)
            e = jnp.exp(s)
            p = e * pl.reciprocal(jnp.sum(e, axis=-1, keepdims=True), approx=True)
            ctx_h = jnp.dot(p.astype(jnp.bfloat16), vh,
                            preferred_element_type=jnp.float32)      # [T, dh]
            ctx_ref[:, sl] = ctx_h.astype(jnp.bfloat16)

        # fused out_proj + bias + residual, lane-dense [T, D] store
        out = jnp.dot(ctx_ref[...], wo_ref[...], preferred_element_type=jnp.float32)
        o_ref[...] = (out + bo_ref[...] + x_ref[...]).astype(o_ref.dtype)

    return kernel


def rel_attention(qkv, r_h, r_w_bias, r_r_bias, mask_bias, x2, w_o_bf16, b_o,
                  *, T, B, H, dh, D, scale):
    mode, r_shift, r_stride = _rel_shift_mode(T)
    kernel = _make_attn_kernel(T, H, dh, D, scale, mode, r_shift, r_stride)
    return pl.pallas_call(
        kernel,
        grid=(B,),
        in_specs=[
            pl.BlockSpec((T, 3 * D), lambda b: (b, 0)),        # qkv slab, per batch
            pl.BlockSpec((2 * T - 1, D), lambda b: (0, 0)),    # pos proj, resident
            pl.BlockSpec((H, dh), lambda b: (0, 0)),
            pl.BlockSpec((H, dh), lambda b: (0, 0)),
            pl.BlockSpec((1, 1, T), lambda b: (b, 0, 0)),      # additive mask bias
            pl.BlockSpec((T, D), lambda b: (b, 0)),            # residual
            pl.BlockSpec((D, D), lambda b: (0, 0)),            # W_o, resident
            pl.BlockSpec((1, D), lambda b: (0, 0)),
        ],
        out_specs=pl.BlockSpec((T, D), lambda b: (b, 0)),      # lane-dense [T, D]
        out_shape=jax.ShapeDtypeStruct((B * T, D), jnp.float32),
        scratch_shapes=[pltpu.VMEM((T, D), jnp.bfloat16)],
        compiler_params=pltpu.CompilerParams(
            dimension_semantics=("parallel",),
            vmem_limit_bytes=VMEM_LIMIT),
    )(qkv, r_h, r_w_bias, r_r_bias, mask_bias, x2, w_o_bf16, b_o.reshape(1, -1))


# ---------------- fused LayerNorm + FFN (ReLU) + residual kernel -------------
def _ln_ffn_kernel(x_ref, g_ref, b_ref, w1_ref, b1_ref, w2_ref, b2_ref,
                   o_ref, acc_ref, xn_ref):
    f = pl.program_id(1)

    @pl.when(f == 0)
    def _():
        x = x_ref[...].astype(jnp.float32)
        mu = jnp.mean(x, axis=-1, keepdims=True)
        var = jnp.mean(jnp.square(x - mu), axis=-1, keepdims=True)
        xn = (x - mu) * jax.lax.rsqrt(var + LN_EPS)
        xn_ref[...] = (xn * g_ref[...] + b_ref[...]).astype(jnp.bfloat16)
        acc_ref[...] = jnp.zeros_like(acc_ref)

    h = jnp.dot(xn_ref[...], w1_ref[...], preferred_element_type=jnp.float32)
    h = jnp.maximum(h + b1_ref[...], 0.0).astype(jnp.bfloat16)       # ReLU
    acc_ref[...] += jnp.dot(h, w2_ref[...], preferred_element_type=jnp.float32)

    @pl.when(f == pl.num_programs(1) - 1)
    def _():
        o_ref[...] = (acc_ref[...] + b2_ref[...] + x_ref[...]).astype(o_ref.dtype)


def ln_ffn(x2, gamma, beta, w1_bf16, b1, w2_bf16, b2):
    n, d = x2.shape
    f_dim = w1_bf16.shape[1]
    tr = _pick_row_tile(n)
    tf = _pick_f_tile(f_dim)
    return pl.pallas_call(
        _ln_ffn_kernel,
        grid=(n // tr, f_dim // tf),
        in_specs=[
            pl.BlockSpec((tr, d), lambda i, f: (i, 0)),
            pl.BlockSpec((1, d), lambda i, f: (0, 0)),
            pl.BlockSpec((1, d), lambda i, f: (0, 0)),
            pl.BlockSpec((d, tf), lambda i, f: (0, f)),    # F tiled for VMEM budget
            pl.BlockSpec((1, tf), lambda i, f: (0, f)),
            pl.BlockSpec((tf, d), lambda i, f: (f, 0)),
            pl.BlockSpec((1, d), lambda i, f: (0, 0)),
        ],
        out_specs=pl.BlockSpec((tr, d), lambda i, f: (i, 0)),
        out_shape=jax.ShapeDtypeStruct((n, d), jnp.float32),
        scratch_shapes=[pltpu.VMEM((tr, d), jnp.float32),
                        pltpu.VMEM((tr, d), jnp.bfloat16)],
        compiler_params=pltpu.CompilerParams(
            dimension_semantics=("parallel", "arbitrary"),
            vmem_limit_bytes=VMEM_LIMIT),
    )(x2, gamma.reshape(1, -1), beta.reshape(1, -1),
      w1_bf16, b1.reshape(1, -1), w2_bf16, b2.reshape(1, -1))


# ------------------------------ full layer glue ------------------------------
def transformer_encoder_layer(x, pos_emb, attn_mask, p):
    """Eval-mode forward. Dropout / variational dropout / layer death_rate are identity.
    # TODO(synk): Bayes-by-backprop weight sampling and log_prior /
    #             log_variational_posterior bookkeeping are training-only stochastic
    #             and have no deterministic-forward equivalent.
    """
    T, B, D = x.shape
    H = p["n_heads"]
    assert D % H == 0
    dh = D // H
    scale = 1.0 / math.sqrt(dh)
    N = B * T

    bf16 = jnp.bfloat16
    # batch-major activation slab [B*T, D] so the attention kernel can take whole
    # per-batch row blocks straight from the qkv slab (no q/k/v splits or transposes).
    x2 = x.transpose(1, 0, 2).reshape(N, D)

    # one-time bf16 weight casts (halves weight DMA, enables bf16 MXU)
    w_qkv = p["w_qkv"].astype(bf16)
    w_pos = p["w_pos"].astype(bf16)
    w_o = p["w_o"].astype(bf16)
    w_1 = p["w_1"].astype(bf16)
    w_2 = p["w_2"].astype(bf16)

    # --------- self-attention block ---------
    qkv = ln_matmul(x2, p["ln1_g"], p["ln1_b"], w_qkv, p["b_qkv"])       # [N, 3D] bf16
    r_h = matmul_bf16(pos_emb.reshape(2 * T - 1, D).astype(bf16), w_pos)  # [2T-1, D]
    mask_bias = MASK_NEG * attn_mask.astype(jnp.float32)                  # [B, 1, T]

    attn_res = rel_attention(qkv, r_h, p["r_w_bias"], p["r_r_bias"], mask_bias,
                             x2, w_o, p["b_o"],
                             T=T, B=B, H=H, dh=dh, D=D, scale=scale)      # [N, D] f32

    # --------- feed-forward block ---------
    out = ln_ffn(attn_res, p["ln2_g"], p["ln2_b"], w_1, p["b_1"], w_2, p["b_2"])

    return out.reshape(B, T, D).transpose(1, 0, 2)                        # [T, B, D]


def init_params(key, D, H, F):
    ks = jax.random.split(key, 11)
    s = 0.02
    return {
        "n_heads": H,
        "ln1_g": jnp.ones((D,), jnp.float32),
        "ln1_b": jnp.zeros((D,), jnp.float32),
        "ln2_g": jnp.ones((D,), jnp.float32),
        "ln2_b": jnp.zeros((D,), jnp.float32),
        "w_qkv": s * jax.random.normal(ks[0], (D, 3 * D), jnp.float32),
        "b_qkv": s * jax.random.normal(ks[1], (3 * D,), jnp.float32),
        "w_pos": s * jax.random.normal(ks[2], (D, D), jnp.float32),
        "w_o": s * jax.random.normal(ks[3], (D, D), jnp.float32),
        "b_o": s * jax.random.normal(ks[4], (D,), jnp.float32),
        "r_w_bias": s * jax.random.normal(ks[5], (H, D // H), jnp.float32),
        "r_r_bias": s * jax.random.normal(ks[6], (H, D // H), jnp.float32),
        "w_1": s * jax.random.normal(ks[7], (D, F), jnp.float32),
        "b_1": s * jax.random.normal(ks[8], (F,), jnp.float32),
        "w_2": s * jax.random.normal(ks[9], (F, D), jnp.float32),
        "b_2": s * jax.random.normal(ks[10], (D,), jnp.float32),
    }


# ------------------------- pure-JAX reference (fp32) -------------------------
def reference_layer(x, pos_emb, attn_mask, p):
    T, B, D = x.shape
    H = p["n_heads"]
    dh = D // H
    scale = 1.0 / math.sqrt(dh)

    def ln(v, g, b):
        mu = v.mean(-1, keepdims=True)
        var = ((v - mu) ** 2).mean(-1, keepdims=True)
        return (v - mu) / jnp.sqrt(var + LN_EPS) * g + b

    q_in = ln(x, p["ln1_g"], p["ln1_b"])
    qkv = q_in @ p["w_qkv"] + p["b_qkv"]
    q, k, v = jnp.split(qkv, 3, axis=-1)
    r = pos_emb.reshape(2 * T - 1, D) @ p["w_pos"]

    def heads(t):
        return t.reshape(T, B, H, dh).transpose(1, 2, 0, 3)   # [B, H, T, dh]

    q4, k4, v4 = heads(q), heads(k), heads(v)
    r_h = r.reshape(2 * T - 1, H, dh)
    idx = (T - 1) - jnp.arange(T)[:, None] + jnp.arange(T)[None, :]
    rg = r_h[idx]                                             # [T, T, H, dh]

    ac = jnp.einsum("bhtd,bhsd->bhts", q4 + p["r_w_bias"][None, :, None, :], k4)
    bd = jnp.einsum("bhtd,tshd->bhts", q4 + p["r_r_bias"][None, :, None, :], rg)
    s = (ac + bd) * scale + MASK_NEG * attn_mask.reshape(B, 1, 1, T)
    pattn = jax.nn.softmax(s, axis=-1)
    ctx = jnp.einsum("bhts,bhsd->bhtd", pattn, v4)
    ctx = ctx.transpose(2, 0, 1, 3).reshape(T, B, D)
    attn_out = ctx @ p["w_o"] + p["b_o"] + x

    ff_in = ln(attn_out, p["ln2_g"], p["ln2_b"])
    out = jnp.maximum(ff_in @ p["w_1"] + p["b_1"], 0.0) @ p["w_2"] + p["b_2"] + attn_out
    return out


if __name__ == "__main__":
    T, B, D, H, F = 8, 2, 32, 4, 64  # seq, batch, model_size, n_heads, inner_size
    key = jax.random.PRNGKey(0)
    kx, kp = jax.random.split(key)

    x = jax.random.normal(kx, (T, B, D), jnp.float32)

    # sinusoidal relative position embeddings for positions T-1 .. -(T-1)
    pos = jnp.arange(T - 1, -T, -1).astype(jnp.float32)
    inv_freq = 1.0 / (10000.0 ** (jnp.arange(0, D, 2, dtype=jnp.float32) / D))
    ang = pos[:, None] * inv_freq[None, :]
    pos_emb = jnp.concatenate([jnp.sin(ang), jnp.cos(ang)], axis=-1).reshape(2 * T - 1, 1, D)

    # key padding mask [B, 1, T]: 1.0 where key position is padding
    lengths = jnp.array([T, T - 2])
    attn_mask = (jnp.arange(T)[None, :] >= lengths[:, None]).astype(jnp.float32).reshape(B, 1, T)

    params = init_params(kp, D, H, F)

    out = transformer_encoder_layer(x, pos_emb, attn_mask, params)
    out = jax.block_until_ready(out)
    assert out.shape == (T, B, D)
    assert bool(jnp.all(jnp.isfinite(out)))

    ref = reference_layer(x, pos_emb, attn_mask, params)
    err = float(jnp.max(jnp.abs(out - ref)))
    assert err < 2e-2, f"mismatch vs pure-JAX reference: {err}"

    print("KERNEL_OK")
</pallas_src>

<mosaic_0001>
module attributes {stable_mosaic.version = 11 : i64} {
  func.func @_ln_matmul_kernel(%arg0: i32, %arg1: memref<16x32xf32, #tpu.memory_space<vmem>>, %arg2: memref<1x32xf32, #tpu.memory_space<vmem>>, %arg3: memref<1x32xf32, #tpu.memory_space<vmem>>, %arg4: memref<32x96xbf16, #tpu.memory_space<vmem>>, %arg5: memref<1x96xf32, #tpu.memory_space<vmem>>, %arg6: memref<16x96xbf16, #tpu.memory_space<vmem>>) attributes {dimension_semantics = [#tpu.dimension_semantics<parallel>], iteration_bounds = array<i64: 1>, scalar_prefetch = 0 : i64, scratch_operands = 0 : i64, tpu.core_type = #tpu.core_type<tc>, window_params = [{transform_indices = @transform_0, window_bounds = array<i64: 16, 32>}, {pipeline_mode = #tpu.pipeline_mode<synchronous>, transform_indices = @transform_1, window_bounds = array<i64: 1, 32>}, {pipeline_mode = #tpu.pipeline_mode<synchronous>, transform_indices = @transform_2, window_bounds = array<i64: 1, 32>}, {pipeline_mode = #tpu.pipeline_mode<synchronous>, transform_indices = @transform_3, window_bounds = array<i64: 32, 96>}, {pipeline_mode = #tpu.pipeline_mode<synchronous>, transform_indices = @transform_4, window_bounds = array<i64: 1, 96>}, {transform_indices = @transform_5, window_bounds = array<i64: 16, 96>}]} {
    %c0 = arith.constant 0 : index
    %c0_0 = arith.constant 0 : index
    %0 = vector.load %arg1[%c0, %c0_0] : memref<16x32xf32, #tpu.memory_space<vmem>>, vector<16x32xf32>
    %cst = arith.constant dense<0.000000e+00> : vector<16xf32>
    %1 = vector.multi_reduction <add>, %0, %cst [1] : vector<16x32xf32> to vector<16xf32>
    %2 = vector.shape_cast %1 : vector<16xf32> to vector<16x1xf32>
    %cst_1 = arith.constant 3.200000e+01 : f32
    %3 = vector.broadcast %cst_1 : f32 to vector<16x1xf32>
    %4 = arith.divf %2, %3 : vector<16x1xf32>
    %5 = vector.broadcast %4 : vector<16x1xf32> to vector<16x32xf32>
    %6 = arith.subf %0, %5 : vector<16x32xf32>
    %7 = arith.mulf %6, %6 : vector<16x32xf32>
    %cst_2 = arith.constant dense<0.000000e+00> : vector<16xf32>
    %8 = vector.multi_reduction <add>, %7, %cst_2 [1] : vector<16x32xf32> to vector<16xf32>
    %9 = vector.shape_cast %8 : vector<16xf32> to vector<16x1xf32>
    %cst_3 = arith.constant 3.200000e+01 : f32
    %10 = vector.broadcast %cst_3 : f32 to vector<16x1xf32>
    %11 = arith.divf %9, %10 : vector<16x1xf32>
    %12 = vector.broadcast %4 : vector<16x1xf32> to vector<16x32xf32>
    %13 = arith.subf %0, %12 : vector<16x32xf32>
    %cst_4 = arith.constant 9.99999974E-6 : f32
    %14 = vector.broadcast %cst_4 : f32 to vector<16x1xf32>
    %15 = arith.addf %11, %14 : vector<16x1xf32>
    %16 = math.rsqrt %15 : vector<16x1xf32>
    %17 = vector.broadcast %16 : vector<16x1xf32> to vector<16x32xf32>
    %18 = arith.mulf %13, %17 : vector<16x32xf32>
    %c0_5 = arith.constant 0 : index
    %c0_6 = arith.constant 0 : index
    %19 = vector.load %arg2[%c0_5, %c0_6] : memref<1x32xf32, #tpu.memory_space<vmem>>, vector<1x32xf32>
    %20 = vector.broadcast %19 : vector<1x32xf32> to vector<16x32xf32>
    %21 = arith.mulf %18, %20 : vector<16x32xf32>
    %c0_7 = arith.constant 0 : index
    %c0_8 = arith.constant 0 : index
    %22 = vector.load %arg3[%c0_7, %c0_8] : memref<1x32xf32, #tpu.memory_space<vmem>>, vector<1x32xf32>
    %23 = vector.broadcast %22 : vector<1x32xf32> to vector<16x32xf32>
    %24 = arith.addf %21, %23 : vector<16x32xf32>
    %25 = arith.truncf %24 : vector<16x32xf32> to vector<16x32xbf16>
    %c0_9 = arith.constant 0 : index
    %c0_10 = arith.constant 0 : index
    %26 = vector.load %arg4[%c0_9, %c0_10] : memref<32x96xbf16, #tpu.memory_space<vmem>>, vector<32x96xbf16>
    %cst_11 = arith.constant dense<0.000000e+00> : vector<16x96xf32>
    %27 = tpu.matmul %25, %26, %cst_11 {dimension_numbers = #tpu.dot_dimension_numbers<[1], [0], [0], [1], [0, 0, 1, 1], [], []>} : vector<16x32xbf16>, vector<32x96xbf16>, vector<16x96xf32> -> vector<16x96xf32>
    %c0_12 = arith.constant 0 : index
    %c0_13 = arith.constant 0 : index
    %28 = vector.load %arg5[%c0_12, %c0_13] : memref<1x96xf32, #tpu.memory_space<vmem>>, vector<1x96xf32>
    %29 = vector.broadcast %28 : vector<1x96xf32> to vector<16x96xf32>
    %30 = arith.addf %27, %29 : vector<16x96xf32>
    %31 = arith.truncf %30 : vector<16x96xf32> to vector<16x96xbf16>
    %c0_14 = arith.constant 0 : index
    %c0_15 = arith.constant 0 : index
    %32 = vector.load %arg6[%c0_14, %c0_15] : memref<16x96xbf16, #tpu.memory_space<vmem>>, vector<16x96xbf16>
    tpu.vector_store %arg6[%c0_14, %c0_15], %31 {strides = array<i32>} : memref<16x96xbf16, #tpu.memory_space<vmem>>, vector<16x96xbf16>,
    return
  }
  func.func @transform_0(%arg0: i32) -> (i32, i32) {
    %c0_i32 = arith.constant 0 : i32
    %c0_i32_0 = arith.constant 0 : i32
    return %arg0, %c0_i32 : i32, i32
  }
  func.func @transform_1(%arg0: i32) -> (i32, i32) {
    %c0_i32 = arith.constant 0 : i32
    %c0_i32_0 = arith.constant 0 : i32
    %c0_i32_1 = arith.constant 0 : i32
    return %c0_i32, %c0_i32_0 : i32, i32
  }
  func.func @transform_2(%arg0: i32) -> (i32, i32) {
    %c0_i32 = arith.constant 0 : i32
    %c0_i32_0 = arith.constant 0 : i32
    %c0_i32_1 = arith.constant 0 : i32
    return %c0_i32, %c0_i32_0 : i32, i32
  }
  func.func @transform_3(%arg0: i32) -> (i32, i32) {
    %c0_i32 = arith.constant 0 : i32
    %c0_i32_0 = arith.constant 0 : i32
    %c0_i32_1 = arith.constant 0 : i32
    return %c0_i32, %c0_i32_0 : i32, i32
  }
  func.func @transform_4(%arg0: i32) -> (i32, i32) {
    %c0_i32 = arith.constant 0 : i32
    %c0_i32_0 = arith.constant 0 : i32
    %c0_i32_1 = arith.constant 0 : i32
    return %c0_i32, %c0_i32_0 : i32, i32
  }
  func.func @transform_5(%arg0: i32) -> (i32, i32) {
    %c0_i32 = arith.constant 0 : i32
    %c0_i32_0 = arith.constant 0 : i32
    return %arg0, %c0_i32 : i32, i32
  }
}

</mosaic_0001>

<llo_original>
// kernel: tpu_custom_call.1
$region0: #{tpu_custom_call.1}
  #allocation0 [shape = 'u32[]', space=smem, size = 0x4, offset = 0x4, fixed_abs, tag = 'smem constant byte address 0x4 - core index']
  #allocation1 [shape = 'u32[72,128]{1,0:T(1,128)}', space=vmem, size = 0x9000, scoped, tag = 'internal scratch']
  %s0 = inlined_call_operand.hbm [shape: f32[16,32], index: 0, kind: input, shape index: {}]
  %s1 = inlined_call_operand.hbm [shape: f32[1,32], index: 1, kind: input, shape index: {}]
  %s2 = inlined_call_operand.vmem [shape: f32[1,32], index: 2, kind: input, shape index: {}]
  %s3 = inlined_call_operand.hbm [shape: bf16[32,96], index: 3, kind: input, shape index: {}]
  %s4 = inlined_call_operand.vmem [shape: f32[1,96], index: 4, kind: input, shape index: {}]
  %s5 = inlined_call_operand.hbm [shape: bf16[16,96], index: 5, kind: output, shape index: {}]
  %s6 = sld [smem:[#allocation0]]
  $region42: #{tpu_custom_call.1} parent=0
    _
  %s8 = ssub.s32 1, %s6
  %s9 = scalar_select 0, %s8, %s6
  $region1: #{tpu_custom_call.1} parent=0
    #allocation2 [shape = 'u8[8192]{0}', space=vmem, size = 0x2000, scoped, tag = 'input window, operand 0, single buffered']
    #allocation3 [shape = 's32[1]{0}', space=sflag, size = 0x4, scoped, tag = 'scoped memory for tpu_custom_call.1']
    #allocation4 [shape = 's32[1]{0}', space=sflag, size = 0x4, scoped, tag = 'scoped memory for tpu_custom_call.1']
    #allocation5 [shape = 'u8[512]{0}', space=vmem, size = 0x400, scoped, tag = 'input window, operand 1, single buffered']
    #allocation6 [shape = 's32[1]{0}', space=sflag, size = 0x4, scoped, tag = 'scoped memory for tpu_custom_call.1']
    #allocation7 [shape = 'u8[8192]{0}', space=vmem, size = 0x2000, scoped, tag = 'input window, operand 3, single buffered']
    #allocation8 [shape = 'u8[4096]{0}', space=vmem, size = 0x1000, scoped, tag = 'output window, operand 0, single buffered']
    %10 = vsyncpa [#allocation3], 0
    %11 = vsyncpa [#allocation6], 0
    %12 = vsyncpa [#allocation4], 0
    // Predicated region
    $region2: #{tpu_custom_call.1} parent=1 // pred_check
      _
    $region3: #{tpu_custom_call.1} parent=1 // pred_check_branch
      %14 = sbr.rel (0) target = $region5
    $region4: #{tpu_custom_call.1} parent=1 // pred_region
      %16 = vsyncadd [#allocation3], 0
      %s17 = sshll.u32 %s0, 4
      %s18 = int_to_ptr.hbm [resolvable:$true] %s17
      %s19 = sshll.u32 [#allocation2], 4
      %s20 = int_to_ptr.vmem [resolvable:$true] %s19
      %25 = dma.hbm_to_vmem [thread:$0]  %s18, 256, %s20, [#allocation3], 128, 128, 8
    $region5: #{tpu_custom_call.1} parent=1 // pred_fallthru
      _
    // Predicated region
    $region6: #{tpu_custom_call.1} parent=1 // pred_check
      _
    $region7: #{tpu_custom_call.1} parent=1 // pred_check_branch
      %27 = sbr.rel (0) target = $region9
    $region8: #{tpu_custom_call.1} parent=1 // pred_region
      %29 = vsyncadd [#allocation6], 0
      %s31 = sshll.u32 %s1, 4
      %s32 = int_to_ptr.hbm [resolvable:$true] %s31
      %s33 = sshll.u32 [#allocation5], 4
      %s34 = int_to_ptr.vmem [resolvable:$true] %s33
      %36 = dma.hbm_to_vmem [thread:$0]  %s32, 16, %s34, [#allocation6]
    $region9: #{tpu_custom_call.1} parent=1 // pred_fallthru
      _
    // Predicated region
    $region10: #{tpu_custom_call.1} parent=1 // pred_check
      _
    $region11: #{tpu_custom_call.1} parent=1 // pred_check_branch
      %38 = sbr.rel (0) target = $region13
    $region12: #{tpu_custom_call.1} parent=1 // pred_region
      _
    $region13: #{tpu_custom_call.1} parent=1 // pred_fallthru
      _
    // Predicated region
    $region14: #{tpu_custom_call.1} parent=1 // pred_check
      _
    $region15: #{tpu_custom_call.1} parent=1 // pred_check_branch
      %40 = sbr.rel (0) target = $region17
    $region16: #{tpu_custom_call.1} parent=1 // pred_region
      %42 = vsyncadd [#allocation6], 0
      %s43 = sshll.u32 %s3, 4
      %s44 = int_to_ptr.hbm [resolvable:$true] %s43
      %s45 = sshll.u32 [#allocation7], 4
      %s46 = int_to_ptr.vmem [resolvable:$true] %s45
      %51 = dma.hbm_to_vmem [thread:$0]  %s44, 256, %s46, [#allocation6], 64, 64, 4
    $region17: #{tpu_custom_call.1} parent=1 // pred_fallthru
      _
    // Predicated region
    $region18: #{tpu_custom_call.1} parent=1 // pred_check
      _
    $region19: #{tpu_custom_call.1} parent=1 // pred_check_branch
      %53 = sbr.rel (0) target = $region21
    $region20: #{tpu_custom_call.1} parent=1 // pred_region
      _
    $region21: #{tpu_custom_call.1} parent=1 // pred_fallthru
      _
    // Predicated region
    $region22: #{tpu_custom_call.1} parent=1 // pred_check
      _
    $region23: #{tpu_custom_call.1} parent=1 // pred_check_branch
      %55 = sbr.rel (0) target = $region25
    $region24: #{tpu_custom_call.1} parent=1 // pred_region
      %57 = dma.done [#allocation3], 256
    $region25: #{tpu_custom_call.1} parent=1 // pred_fallthru
      _
    // Predicated region
    $region26: #{tpu_custom_call.1} parent=1 // pred_check
      _
    $region27: #{tpu_custom_call.1} parent=1 // pred_check_branch
      %59 = sbr.rel (0) target = $region29
    $region28: #{tpu_custom_call.1} parent=1 // pred_region
      %61 = dma.done [#allocation6], 16
    $region29: #{tpu_custom_call.1} parent=1 // pred_fallthru
      _
    // Predicated region
    $region30: #{tpu_custom_call.1} parent=1 // pred_check
      _
    $region31: #{tpu_custom_call.1} parent=1 // pred_check_branch
      %63 = sbr.rel (0) target = $region33
    $region32: #{tpu_custom_call.1} parent=1 // pred_region
      %65 = dma.done [#allocation6], 256
    $region33: #{tpu_custom_call.1} parent=1 // pred_fallthru
      _
    %v67 = vld [vmem:[#allocation2] sm:$0xff]
    %v68 = vld [vmem:[#allocation2 + $0x8] sm:$0xff]
    %vm69 = vcmask 261120
    %v70 = vsel %vm69, %v67, 0.0
    %71 = vadd.xlane.f32.xlu0 %v70
    %v72 = vpop.xlane.xlu0 %71
    %v73 = vsel %vm69, %v68, 0.0
    %74 = vadd.xlane.f32.xlu0 %v73
    %v75 = vpop.xlane.xlu0 %74
    %v76 = vrcp.pop 32.0
    %v77 = vmul.f32 32.0, %v76
    %v78 = vsub.f32 1.0, %v77
    %v79 = vmul.f32 %v76, %v78
    %v80 = vadd.f32 %v76, %v79
    %vm81 = vweird.f32 %v76
    %v82 = vsel %vm81, %v76, %v80
    %v83 = vmul.f32 %v72, %v82
    %v84 = vmul.f32 %v75, %v82
    %v85 = vsub.f32 %v67, %v83
    %v86 = vsub.f32 %v68, %v84
    %v87 = vmul.f32 %v85, %v85
    %v88 = vmul.f32 %v86, %v86
    %v89 = vsel %vm69, %v87, 0.0
    %90 = vadd.xlane.f32.xlu0 %v89
    %v91 = vpop.xlane.xlu0 %90
    %v92 = vsel %vm69, %v88, 0.0
    %93 = vadd.xlane.f32.xlu0 %v92
    %v94 = vpop.xlane.xlu0 %93
    %v95 = vmul.f32 %v91, %v82
    %v96 = vmul.f32 %v94, %v82
    %v97 = vadd.f32 %v95, 1e-05
    %v98 = vadd.f32 %v96, 1e-05
    %v99 = vrsqrt.pop %v97
    %v100 = vmul.f32 %v99, %v97
    %v101 = vmul.f32 %v100, %v99
    %v102 = vmul.f32 0.5, %v101
    %v103 = vsub.f32 1.5, %v102
    %v104 = vmul.f32 %v99, %v103
    %vm105 = vweird.f32 %v97
    %vm106 = vweird.f32 %v99
    %vm107 = vmor %vm105, %vm106
    %v108 = vsel %vm107, %v99, %v104
    %v109 = vrsqrt.pop %v98
    %v110 = vmul.f32 %v109, %v98
    %v111 = vmul.f32 %v110, %v109
    %v112 = vmul.f32 0.5, %v111
    %v113 = vsub.f32 1.5, %v112
    %v114 = vmul.f32 %v109, %v113
    %vm115 = vweird.f32 %v98
    %vm116 = vweird.f32 %v109
    %vm117 = vmor %vm115, %vm116
    %v118 = vsel %vm117, %v109, %v114
    %v119 = vmul.f32 %v85, %v108
    %v120 = vmul.f32 %v86, %v118
    %v121 = vld [vmem:[#allocation5] sm:$0x1]
    %v123 = vperm.slane %v121, 0
    %v125 = vmul.f32 %v119, %v123
    %v126 = vmul.f32 %v120, %v123
    %v127 = vld [vmem:[%s2] sm:$0x1]
    %v129 = vperm.slane %v127, 0
    %v131 = vadd.f32 %v125, %v129
    %v132 = vadd.f32 %v126, %v129
    %v133 = vpack.c.bf16 %v132, %v131
    %v134 = vld [vmem:[#allocation7] sm:$0xf]
    %v135 = vld [vmem:[#allocation7 + $0x4] sm:$0xf]
    %v136 = vld [vmem:[#allocation7 + $0x8] sm:$0xf]
    %v137 = vld [vmem:[#allocation7 + $0xc] sm:$0xf]
    %v138 = vld [vmem:[%s4] sm:$0x1]
    %v140 = vperm.slane %v138, 0
    %v146 = vunpack.c.l.b16 %v134
    %v147 = vunpack.c.l.b16 %v135
    %v148 = vunpack.c.l.b16 %v136
    %v149 = vunpack.c.l.b16 %v137
    %v150 = vpack.c.b16 %v147, %v146
    %v151 = vpack.c.b16 %v149, %v148
    %v155 = vsel %vm69, %v133, 0
    %157 = vmatpush.bf16.msra.mxu0 0
    %158 = vmatpush.bf16.msra.mxu0 0
    %159 = vmatpush.bf16.msra.mxu0 0
    %160 = vmatpush.bf16.msra.mxu0 0
    %161 = vmatpush.bf16.msra.mxu0 0
    %162 = vmatpush.bf16.msra.mxu0 0
    %163 = vmatpush.bf16.msra.mxu0 %v151
    %164 = vmatpush.bf16.msra.mxu0 %v150
    %165 = vmatmul.bf16.gmra.mxu0 %v155
    %v166 = vpop.f32.mrf.mxu0
    %v167 = vadd.f32 %v140, %v166
    %v168 = vpop.f32.mrf.mxu0
    %v169 = vadd.f32 %v140, %v168
    %170 = vdwg.mxu0
    %v171 = vpack.c.bf16 %v167, %v167
    %v172 = vpack.c.bf16 %v169, %v169
    %vm173 = vcmask 781312
    %174 = vst.msk [vmem:[#allocation8] sm:$0xf] %vm173, %v171
    %175 = vst.msk [vmem:[#allocation8 + $0x4] sm:$0xf] %vm173, %v172
    // Predicated region
    $region34: #{tpu_custom_call.1} parent=1 // pred_check
      _
    $region35: #{tpu_custom_call.1} parent=1 // pred_check_branch
      %177 = sbr.rel (0) target = $region37
    $region36: #{tpu_custom_call.1} parent=1 // pred_region
      %179 = vsyncadd [#allocation4], 0
      %s180 = sshll.u32 [#allocation8], 4
      %s181 = int_to_ptr.vmem [resolvable:$true] %s180
      %s182 = sshll.u32 %s5, 4
      %s183 = int_to_ptr.hbm [resolvable:$true] %s182
      %188 = dma.vmem_to_hbm [thread:$0]  %s181, 128, %s183, [#allocation4], 64, 64, 4
    $region37: #{tpu_custom_call.1} parent=1 // pred_fallthru
      _
    // Predicated region
    $region38: #{tpu_custom_call.1} parent=1 // pred_check
      _
    $region39: #{tpu_custom_call.1} parent=1 // pred_check_branch
      %190 = sbr.rel (0) target = $region41
    $region40: #{tpu_custom_call.1} parent=1 // pred_region
      %192 = dma.done [#allocation4], 128
    $region41: #{tpu_custom_call.1} parent=1 // pred_fallthru
      _
    %193 = vsyncpa [#allocation3], 1
    %194 = vsyncpa [#allocation6], 1
    %195 = vsyncpa [#allocation4], 1

</llo_original>
